<compile_context>
chip_gen: v6e
topology: v6e:2x2x1
jax: 0.10.0
libtpu: 0.0.40
codegen_flags: <defaults>
</compile_context>

<pallas_src>
import functools

import jax
import jax.numpy as jnp
from jax import lax
from jax.experimental import pallas as pl
from jax.experimental.pallas import tpu as pltpu

LANES = 128
BLOCK_ROWS = 4096            # (4096, 128) f32 = 2 MiB per input per grid step
GRIDLESS_MAX_ROWS = BLOCK_ROWS


def _ceil_div(a: int, b: int) -> int:
    return -(-a // b)


# ---------------------------------------------------------------------------
# Small path: whole problem in one VMEM block, no grid at all.
# ---------------------------------------------------------------------------
def _l1_small_kernel(x_ref, r_ref, o_ref):
    o_ref[...] = jnp.sum(jnp.abs(x_ref[...] - r_ref[...]), keepdims=True)


def _l1_loss_small(x2, r2):
    out = pl.pallas_call(
        _l1_small_kernel,
        out_shape=jax.ShapeDtypeStruct((1, 1), jnp.float32),
        in_specs=[
            pl.BlockSpec(memory_space=pltpu.MemorySpace.VMEM),
            pl.BlockSpec(memory_space=pltpu.MemorySpace.VMEM),
        ],
        out_specs=pl.BlockSpec(memory_space=pltpu.MemorySpace.VMEM),
    )(x2, r2)
    return out[0, 0]


# ---------------------------------------------------------------------------
# Large path: 2 MiB blocks, in-kernel tail masking, (8,128) vreg-tree acc.
# ---------------------------------------------------------------------------
def _l1_tiled_kernel(x_ref, r_ref, o_ref, acc_ref, *, total_rows):
    i = pl.program_id(0)

    d = jnp.abs(x_ref[...] - r_ref[...])                 # (BLOCK_ROWS, 128) VPU

    if total_rows % BLOCK_ROWS != 0:
        # Final grid block is partial: rows past `total_rows` contain garbage
        # (edge blocks are not zero-filled by Pallas) -> mask them out.
        row = lax.broadcasted_iota(jnp.int32, d.shape, 0) + i * BLOCK_ROWS
        d = jnp.where(row < total_rows, d, 0.0)

    # Tile-aligned vreg-tree partial reduce (pure VALU, no XLU):
    # (BLOCK_ROWS, 128) -> (BLOCK_ROWS//8, 8, 128) -> sum over leading axis.
    part = jnp.sum(d.reshape(BLOCK_ROWS // 8, 8, LANES), axis=0)

    @pl.when(i == 0)
    def _():
        acc_ref[...] = part                               # no separate zero-init

    @pl.when(i > 0)
    def _():
        acc_ref[...] += part

    @pl.when(i == pl.num_programs(0) - 1)
    def _():
        o_ref[...] = jnp.sum(acc_ref[...], keepdims=True)  # single XLU reduce


def _l1_loss_tiled(x2, r2, total_rows):
    num_blocks = _ceil_div(total_rows, BLOCK_ROWS)
    kernel = functools.partial(_l1_tiled_kernel, total_rows=total_rows)
    out = pl.pallas_call(
        kernel,
        out_shape=jax.ShapeDtypeStruct((1, 1), jnp.float32),
        grid=(num_blocks,),
        in_specs=[
            pl.BlockSpec((BLOCK_ROWS, LANES), lambda i: (i, 0)),
            pl.BlockSpec((BLOCK_ROWS, LANES), lambda i: (i, 0)),
        ],
        out_specs=pl.BlockSpec((1, 1), lambda i: (0, 0)),
        scratch_shapes=[pltpu.VMEM((8, LANES), jnp.float32)],
        compiler_params=pltpu.CompilerParams(
            dimension_semantics=("arbitrary",),
            vmem_limit_bytes=32 * 1024 * 1024,
        ),
    )(x2, r2)
    return out[0, 0]


def _as_slab(v, n):
    """Flat length-n vector -> lane-dense 2-D slab.

    Zero-copy reshape when n is a multiple of 128; tiny vectors stay (1, n);
    otherwise pad to the next multiple of 128 (both inputs are padded
    identically so padded elements contribute |0 - 0| = 0 to the loss).
    """
    if n % LANES == 0:
        return v.reshape(n // LANES, LANES)
    if n <= 1024:
        return v.reshape(1, n)
    rows = _ceil_div(n, LANES)
    return jnp.pad(v, (0, rows * LANES - n)).reshape(rows, LANES)


def bsdf_eval_forward(x: jax.Array, params_ref: jax.Array) -> jax.Array:
    """Pallas implementation of BSDFEvalModule.forward: L1 loss to reference.

    x, params_ref: 1-D arrays of identical length (falcor.Material.PARAM_COUNT).
    Returns a scalar float32 loss.
    """
    assert x.shape == params_ref.shape and x.ndim == 1
    n = x.shape[0]
    x2 = _as_slab(x.astype(jnp.float32), n)
    r2 = _as_slab(params_ref.astype(jnp.float32), n)
    rows = x2.shape[0]
    if rows <= GRIDLESS_MAX_ROWS:
        return _l1_loss_small(x2, r2)
    return _l1_loss_tiled(x2, r2, rows)


if __name__ == "__main__":
    key = jax.random.PRNGKey(0)
    keys = jax.random.split(key, 8)

    def check(n, kx, kr, rtol, atol):
        x = jax.random.normal(kx, (n,), dtype=jnp.float32)
        r = jax.random.normal(kr, (n,), dtype=jnp.float32)
        loss = jax.block_until_ready(bsdf_eval_forward(x, r))
        expected = jnp.sum(jnp.abs(x - r))
        assert jnp.allclose(loss, expected, rtol=rtol, atol=atol), (n, loss, expected)

    # Real workload: falcor.Material.PARAM_COUNT-sized flat parameter vector.
    check(20, keys[0], keys[1], 1e-6, 1e-6)
    # Mid-size, gridless lane-dense path (padded to a multiple of 128).
    check(50_000, keys[2], keys[3], 1e-5, 1e-2)
    # Tiled path, 128-aligned (zero-copy reshape) with a partial final block.
    check(640_000, keys[4], keys[5], 1e-4, 1e-1)
    # Tiled path, unaligned length (pad-to-128 + partial-final-block masking).
    check(1_300_003, keys[6], keys[7], 1e-4, 1e-1)

    print("KERNEL_OK")
</pallas_src>

<mosaic_0001>
module attributes {stable_mosaic.version = 11 : i64} {
  func.func @_l1_small_kernel(%arg0: memref<1x20xf32, #tpu.memory_space<vmem>>, %arg1: memref<1x20xf32, #tpu.memory_space<vmem>>, %arg2: memref<1x1xf32, #tpu.memory_space<vmem>>) attributes {dimension_semantics = [], scalar_prefetch = 0 : i64, scratch_operands = 0 : i64, tpu.core_type = #tpu.core_type<tc>} {
    %c0 = arith.constant 0 : index
    %c0_0 = arith.constant 0 : index
    %0 = vector.load %arg0[%c0, %c0_0] : memref<1x20xf32, #tpu.memory_space<vmem>>, vector<1x20xf32>
    %c0_1 = arith.constant 0 : index
    %c0_2 = arith.constant 0 : index
    %1 = vector.load %arg1[%c0_1, %c0_2] : memref<1x20xf32, #tpu.memory_space<vmem>>, vector<1x20xf32>
    %2 = arith.subf %0, %1 : vector<1x20xf32>
    %3 = math.absf %2 : vector<1x20xf32>
    %4 = vector.shape_cast %3 : vector<1x20xf32> to vector<1x1x20xf32>
    %cst = arith.constant dense<0.000000e+00> : vector<1xf32>
    %5 = vector.multi_reduction <add>, %4, %cst [1, 2] : vector<1x1x20xf32> to vector<1xf32>
    %6 = vector.shape_cast %5 : vector<1xf32> to vector<1x1x1xf32>
    %7 = vector.extract %6[0, 0, 0] : f32 from vector<1x1x1xf32>
    %8 = vector.broadcast %7 : f32 to vector<1x1xf32>
    %c0_3 = arith.constant 0 : index
    %c0_4 = arith.constant 0 : index
    %9 = vector.load %arg2[%c0_3, %c0_4] : memref<1x1xf32, #tpu.memory_space<vmem>>, vector<1x1xf32>
    tpu.vector_store %arg2[%c0_3, %c0_4], %8 {strides = array<i32>} : memref<1x1xf32, #tpu.memory_space<vmem>>, vector<1x1xf32>,
    return
  }
}

</mosaic_0001>

<llo_original>
// kernel: tpu_custom_call.1
$region0: #{tpu_custom_call.1}
  #allocation0 [shape = 'u32[]', space=smem, size = 0x4, offset = 0x4, fixed_abs, tag = 'smem constant byte address 0x4 - core index']
  #allocation1 [shape = 'u32[144,128]{1,0:T(1,128)}', space=vmem, size = 0x12000, scoped, tag = 'internal scratch']
  %s0 = inlined_call_operand.hbm [shape: f32[1,20], index: 0, kind: input, shape index: {}]
  %s1 = inlined_call_operand.vmem [shape: f32[1,20], index: 1, kind: input, shape index: {}]
  %s2 = inlined_call_operand.hbm [shape: f32[1,1], index: 2, kind: output, shape index: {}]
  %s3 = sld [smem:[#allocation0]]
  $region22: #{tpu_custom_call.1} parent=0
    _
  %s5 = ssub.s32 1, %s3
  %s6 = scalar_select 0, %s5, %s3
  $region1: #{tpu_custom_call.1} parent=0
    #allocation2 [shape = 'u8[512]{0}', space=vmem, size = 0x400, scoped, tag = 'input window, operand 0, single buffered']
    #allocation3 [shape = 's32[1]{0}', space=sflag, size = 0x4, scoped, tag = 'scoped memory for tpu_custom_call.1']
    #allocation4 [shape = 's32[1]{0}', space=sflag, size = 0x4, scoped, tag = 'scoped memory for tpu_custom_call.1']
    #allocation5 [shape = 'u8[512]{0}', space=vmem, size = 0x400, scoped, tag = 'output window, operand 0, single buffered']
    %7 = vsyncpa [#allocation3], 0
    %8 = vsyncpa [#allocation4], 0
    // Predicated region
    $region2: #{tpu_custom_call.1} parent=1 // pred_check
      _
    $region3: #{tpu_custom_call.1} parent=1 // pred_check_branch
      %10 = sbr.rel (0) target = $region5
    $region4: #{tpu_custom_call.1} parent=1 // pred_region
      %s12 = ssub.s32 16, 16
      %13 = vsyncadd [#allocation3], %s12
      %s15 = sshll.u32 [#allocation2], 4
      %s16 = int_to_ptr.vmem [resolvable:$true] %s15
      %18 = dma.hbm_to_vmem [thread:$0]  %s0, 16, %s16, [#allocation3]
    $region5: #{tpu_custom_call.1} parent=1 // pred_fallthru
      _
    // Predicated region
    $region6: #{tpu_custom_call.1} parent=1 // pred_check
      _
    $region7: #{tpu_custom_call.1} parent=1 // pred_check_branch
      %20 = sbr.rel (0) target = $region9
    $region8: #{tpu_custom_call.1} parent=1 // pred_region
      _
    $region9: #{tpu_custom_call.1} parent=1 // pred_fallthru
      _
    // Predicated region
    $region10: #{tpu_custom_call.1} parent=1 // pred_check
      _
    $region11: #{tpu_custom_call.1} parent=1 // pred_check_branch
      %22 = sbr.rel (0) target = $region13
    $region12: #{tpu_custom_call.1} parent=1 // pred_region
      %23 = dma.done [#allocation3], 16
    $region13: #{tpu_custom_call.1} parent=1 // pred_fallthru
      _
    %v24 = vld [vmem:[#allocation2] sm:$0x1]
    %v25 = vld [vmem:[%s1] sm:$0x1]
    %v26 = vsub.f32 %v24, %v25
    %v27 = vand.u32 2147483647, %v26
    %vm28 = vcmask 155648
    %v29 = vsel %vm28, %v27, 0.0
    %30 = vadd.xlane.f32.xlu0 %v29
    %v31 = vpop.xlane.xlu0 %30
    %v32 = vrot.slane %v31, 4
    %v33 = vadd.f32 %v31, %v32
    %v34 = vrot.slane %v33, 2
    %v35 = vadd.f32 %v33, %v34
    %v36 = vrot.slane %v35, 1
    %v37 = vadd.f32 %v35, %v36
    %s38 = vtos %v37
    %v39 = vstv %s38
    %vm40 = vcmask 0
    %41 = vst.msk [vmem:[#allocation5] sm:$0x1] %vm40, %v39
    // Predicated region
    $region14: #{tpu_custom_call.1} parent=1 // pred_check
      _
    $region15: #{tpu_custom_call.1} parent=1 // pred_check_branch
      %43 = sbr.rel (0) target = $region17
    $region16: #{tpu_custom_call.1} parent=1 // pred_region
      %s45 = ssub.s32 16, 16
      %46 = vsyncadd [#allocation4], %s45
      %s48 = sshll.u32 [#allocation5], 4
      %s49 = int_to_ptr.vmem [resolvable:$true] %s48
      %51 = dma.vmem_to_hbm [thread:$0]  %s49, 16, %s2, [#allocation4]
    $region17: #{tpu_custom_call.1} parent=1 // pred_fallthru
      _
    // Predicated region
    $region18: #{tpu_custom_call.1} parent=1 // pred_check
      _
    $region19: #{tpu_custom_call.1} parent=1 // pred_check_branch
      %53 = sbr.rel (0) target = $region21
    $region20: #{tpu_custom_call.1} parent=1 // pred_region
      %54 = dma.done [#allocation4], 16
    $region21: #{tpu_custom_call.1} parent=1 // pred_fallthru
      _
    %55 = vsyncpa [#allocation3], 1
    %56 = vsyncpa [#allocation4], 1

</llo_original>
